<compile_context>
chip_gen: v7x
topology: tpu7x:2x2x1
jax: 0.10.0
libtpu: 0.0.40
codegen_flags: <defaults>
</compile_context>

<pallas_src>
import functools
import math

import jax
import jax.numpy as jnp
from jax.experimental import pallas as pl
from jax.experimental.pallas import tpu as pltpu


# ------------------ Phase 1: mat-GRU weight-evolution scan ------------------
def gru_scan_kernel(Wcat_ref, Uh_ref, bz_ref, br_ref, bh_ref, W0_ref,
                    q_out_ref, Q_scr, *, in_f):
    t = pl.program_id(0)
    f32 = jnp.float32

    # Initialize the evolving GCN weights on the first timestep.
    @pl.when(t == 0)
    def _():
        Q_scr[...] = W0_ref[...]

    Q = Q_scr[...]

    # Fused gate matmul: [Wz; Uz; Wr; Ur; Wh] @ Q in a single MXU push.
    G = jnp.dot(Wcat_ref[...], Q, preferred_element_type=f32)
    z = jax.nn.sigmoid(G[0 * in_f:1 * in_f] + G[1 * in_f:2 * in_f] + bz_ref[...])
    r = jax.nn.sigmoid(G[2 * in_f:3 * in_f] + G[3 * in_f:4 * in_f] + br_ref[...])
    h_t = jnp.tanh(G[4 * in_f:5 * in_f]
                   + jnp.dot(Uh_ref[...], r * Q, preferred_element_type=f32)
                   + bh_ref[...])
    new_Q = (1.0 - z) * Q + z * h_t
    Q_scr[...] = new_Q
    q_out_ref[...] = new_Q.astype(q_out_ref.dtype)


def evolve_weights(params, T):
    """Run the mat-GRU recurrence over T steps; returns Q_seq (T, in_f, out_f)."""
    in_f, out_f = params["W0"].shape
    Wcat = jnp.concatenate(
        [params["Wz"], params["Uz"], params["Wr"], params["Ur"], params["Wh"]],
        axis=0).astype(jnp.float32)
    inputs = [Wcat, params["Uh"], params["bz"], params["br"], params["bh"],
              params["W0"]]
    in_specs = [pl.BlockSpec(p.shape, lambda t: (0, 0)) for p in inputs]

    fn = pl.pallas_call(
        functools.partial(gru_scan_kernel, in_f=in_f),
        out_shape=jax.ShapeDtypeStruct((T, in_f, out_f), jnp.float32),
        grid_spec=pltpu.PrefetchScalarGridSpec(
            num_scalar_prefetch=0,
            grid=(T,),
            in_specs=in_specs,
            out_specs=pl.BlockSpec((pl.Squeezed(), in_f, out_f),
                                   lambda t: (t, 0, 0)),
            scratch_shapes=[pltpu.VMEM((in_f, out_f), jnp.float32)],
        ),
        compiler_params=pltpu.CompilerParams(
            dimension_semantics=("arbitrary",)),  # time axis carries Q state
    )
    return fn(*inputs)


# --------------------- Phase 2: parallel GCN application --------------------
def gcn_kernel(A_ref, X_ref, Q_ref, out_ref, *, assoc_left):
    f32 = jnp.float32
    if assoc_left:
        # (A @ X) @ Q : cheaper when in_f < out_f, and gives the big N^2
        # matmul a K of N instead of tiny in_f.
        AX = jnp.dot(A_ref[...], X_ref[...], preferred_element_type=f32)
        AXW = jnp.dot(AX, Q_ref[...], preferred_element_type=f32)
    else:
        # A @ (X @ Q) : cheaper when out_f < in_f.
        XW = jnp.dot(X_ref[...], Q_ref[...], preferred_element_type=f32)
        AXW = jnp.dot(A_ref[...], XW, preferred_element_type=f32)
    out_ref[...] = jnp.maximum(AXW, 0.0).astype(out_ref.dtype)


def _pick_row_tile(N, max_tile=512):
    """Row-tile of A: full N when small, else the largest aligned divisor."""
    if N <= max_tile:
        return N
    for tn in (512, 256, 128, 64, 32, 16, 8):
        if N % tn == 0:
            return tn
    return N


def gcn_apply(A_seq, X_seq, Q_seq, *, compute_dtype=None):
    T, N, _ = A_seq.shape
    in_f = X_seq.shape[-1]
    out_f = Q_seq.shape[-1]
    tn = _pick_row_tile(N)
    assoc_left = in_f < out_f

    if compute_dtype is not None:
        # Optional bf16 streaming for the HBM-bound A/X/Q; f32 accumulation.
        A_seq = A_seq.astype(compute_dtype)
        X_seq = X_seq.astype(compute_dtype)
        Q_seq = Q_seq.astype(compute_dtype)

    fn = pl.pallas_call(
        functools.partial(gcn_kernel, assoc_left=assoc_left),
        out_shape=jax.ShapeDtypeStruct((T, N, out_f), jnp.float32),
        grid=(T, N // tn),
        in_specs=[
            pl.BlockSpec((pl.Squeezed(), tn, N), lambda t, i: (t, i, 0)),     # A row tile
            pl.BlockSpec((pl.Squeezed(), N, in_f), lambda t, i: (t, 0, 0)),   # X_t
            pl.BlockSpec((pl.Squeezed(), in_f, out_f), lambda t, i: (t, 0, 0)),  # Q_t
        ],
        out_specs=pl.BlockSpec((pl.Squeezed(), tn, out_f), lambda t, i: (t, i, 0)),
        compiler_params=pltpu.CompilerParams(
            dimension_semantics=("parallel", "parallel")),  # no cross-step state
    )
    return fn(A_seq, X_seq, Q_seq)


def grcu_layer(A_seq, X_seq, params, *, compute_dtype=None):
    """One GRCU layer over the full time sequence."""
    T = A_seq.shape[0]
    Q_seq = evolve_weights(params, T)  # tiny sequential scan
    return gcn_apply(A_seq, X_seq, Q_seq, compute_dtype=compute_dtype)


def egcn_forward(A_seq, X_seq, layer_params, feates, *, compute_dtype=None):
    """EGCN forward: stack of GRCU layers applied to the whole sequence."""
    nodes = X_seq
    for li in range(1, len(feates)):
        nodes = grcu_layer(A_seq, nodes, layer_params[li - 1],
                           compute_dtype=compute_dtype)
    return nodes  # (T, N, feates[-1]) — list-of-timesteps stacked on axis 0


# ------------------------------ init helpers -------------------------------
def init_gate_params(key, rows, cols):
    kW, kU = jax.random.split(key)
    stdv = 1.0 / math.sqrt(rows)  # uniform(-1/sqrt(size(1)), +)
    return {
        "W": jax.random.uniform(kW, (rows, rows), jnp.float32, -stdv, stdv),
        "U": jax.random.uniform(kU, (rows, rows), jnp.float32, -stdv, stdv),
        "b": jnp.zeros((rows, cols), jnp.float32),
    }


def init_grcu_params(key, in_f, out_f):
    kz, kr, kh, k0 = jax.random.split(key, 4)
    gz = init_gate_params(kz, in_f, out_f)
    gr = init_gate_params(kr, in_f, out_f)
    gh = init_gate_params(kh, in_f, out_f)
    stdv = 1.0 / math.sqrt(out_f)
    W0 = jax.random.uniform(k0, (in_f, out_f), jnp.float32, -stdv, stdv)
    return {
        "Wz": gz["W"], "Uz": gz["U"], "bz": gz["b"],
        "Wr": gr["W"], "Ur": gr["U"], "br": gr["b"],
        "Wh": gh["W"], "Uh": gh["U"], "bh": gh["b"],
        "W0": W0,
    }


# ---------------- pure-JAX reference (for verification) ----------------
def _gate_ref(W, U, b, x, h, act):
    return act(W @ x + U @ h + b)


def egcn_ref(A_seq, X_seq, layer_params, feates):
    nodes = X_seq
    for li in range(1, len(feates)):
        p = layer_params[li - 1]
        Q = p["W0"]
        outs = []
        for t in range(A_seq.shape[0]):
            z = _gate_ref(p["Wz"], p["Uz"], p["bz"], Q, Q, jax.nn.sigmoid)
            r = _gate_ref(p["Wr"], p["Ur"], p["br"], Q, Q, jax.nn.sigmoid)
            h_t = _gate_ref(p["Wh"], p["Uh"], p["bh"], Q, r * Q, jnp.tanh)
            Q = (1.0 - z) * Q + z * h_t
            outs.append(jnp.maximum(A_seq[t] @ (nodes[t] @ Q), 0.0))
        nodes = jnp.stack(outs, axis=0)
    return nodes


if __name__ == "__main__":
    key = jax.random.PRNGKey(0)
    T, N = 3, 16                 # timesteps, nodes per graph
    feates = [8, 32, 16]         # feature dims -> two GRCU layers

    kA, kX, kP = jax.random.split(key, 3)
    A_seq = jax.random.uniform(kA, (T, N, N), jnp.float32)        # Ahat per t
    X_seq = jax.random.uniform(kX, (T, N, feates[0]), jnp.float32)

    layer_keys = jax.random.split(kP, len(feates) - 1)
    layer_params = [init_grcu_params(layer_keys[i], feates[i], feates[i + 1])
                    for i in range(len(feates) - 1)]

    out = egcn_forward(A_seq, X_seq, layer_params, feates)
    out = jax.block_until_ready(out)

    ref = egcn_ref(A_seq, X_seq, layer_params, feates)
    assert out.shape == (T, N, feates[-1])
    assert jnp.allclose(out, ref, atol=1e-4, rtol=1e-4)

    print("KERNEL_OK")
</pallas_src>

<mosaic_0001>
module attributes {stable_mosaic.version = 11 : i64} {
  func.func @gru_scan_kernel(%arg0: i32, %arg1: memref<40x8xf32, #tpu.memory_space<vmem>>, %arg2: memref<8x8xf32, #tpu.memory_space<vmem>>, %arg3: memref<8x32xf32, #tpu.memory_space<vmem>>, %arg4: memref<8x32xf32, #tpu.memory_space<vmem>>, %arg5: memref<8x32xf32, #tpu.memory_space<vmem>>, %arg6: memref<8x32xf32, #tpu.memory_space<vmem>>, %arg7: memref<1x8x32xf32, #tpu.memory_space<vmem>>, %arg8: memref<8x32xf32, #tpu.memory_space<vmem>>) attributes {dimension_semantics = [#tpu.dimension_semantics<arbitrary>], iteration_bounds = array<i64: 3>, scalar_prefetch = 0 : i64, scratch_operands = 1 : i64, tpu.core_type = #tpu.core_type<tc>, window_params = [{pipeline_mode = #tpu.pipeline_mode<synchronous>, transform_indices = @transform_0, window_bounds = array<i64: 40, 8>}, {pipeline_mode = #tpu.pipeline_mode<synchronous>, transform_indices = @transform_1, window_bounds = array<i64: 8, 8>}, {pipeline_mode = #tpu.pipeline_mode<synchronous>, transform_indices = @transform_2, window_bounds = array<i64: 8, 32>}, {pipeline_mode = #tpu.pipeline_mode<synchronous>, transform_indices = @transform_3, window_bounds = array<i64: 8, 32>}, {pipeline_mode = #tpu.pipeline_mode<synchronous>, transform_indices = @transform_4, window_bounds = array<i64: 8, 32>}, {pipeline_mode = #tpu.pipeline_mode<synchronous>, transform_indices = @transform_5, window_bounds = array<i64: 8, 32>}, {transform_indices = @transform_6, window_bounds = array<i64: 1, 8, 32>}]} {
    %c0_i32 = arith.constant 0 : i32
    %0 = arith.cmpi eq, %arg0, %c0_i32 : i32
    %1 = arith.extui %0 : i1 to i32
    %c0_i32_0 = arith.constant 0 : i32
    %2 = arith.cmpi ne, %1, %c0_i32_0 : i32
    scf.if %2 {
      %c0_21 = arith.constant 0 : index
      %c0_22 = arith.constant 0 : index
      %43 = vector.load %arg6[%c0_21, %c0_22] : memref<8x32xf32, #tpu.memory_space<vmem>>, vector<8x32xf32>
      %c0_23 = arith.constant 0 : index
      %c0_24 = arith.constant 0 : index
      %44 = vector.load %arg8[%c0_23, %c0_24] : memref<8x32xf32, #tpu.memory_space<vmem>>, vector<8x32xf32>
      tpu.vector_store %arg8[%c0_23, %c0_24], %43 {strides = array<i32>} : memref<8x32xf32, #tpu.memory_space<vmem>>, vector<8x32xf32>,
    } else {
    }
    %c0 = arith.constant 0 : index
    %c0_1 = arith.constant 0 : index
    %3 = vector.load %arg8[%c0, %c0_1] : memref<8x32xf32, #tpu.memory_space<vmem>>, vector<8x32xf32>
    %c0_2 = arith.constant 0 : index
    %c0_3 = arith.constant 0 : index
    %4 = vector.load %arg1[%c0_2, %c0_3] : memref<40x8xf32, #tpu.memory_space<vmem>>, vector<40x8xf32>
    %cst = arith.constant dense<0.000000e+00> : vector<40x32xf32>
    %5 = tpu.matmul %4, %3, %cst {dimension_numbers = #tpu.dot_dimension_numbers<[1], [0], [0], [1], [0, 0, 1, 1], [], []>} : vector<40x8xf32>, vector<8x32xf32>, vector<40x32xf32> -> vector<40x32xf32>
    %6 = vector.extract_strided_slice %5 {offsets = [0, 0], sizes = [8, 32], strides = [1, 1]} : vector<40x32xf32> to vector<8x32xf32>
    %7 = vector.extract_strided_slice %5 {offsets = [8, 0], sizes = [8, 32], strides = [1, 1]} : vector<40x32xf32> to vector<8x32xf32>
    %8 = arith.addf %6, %7 : vector<8x32xf32>
    %c0_4 = arith.constant 0 : index
    %c0_5 = arith.constant 0 : index
    %9 = vector.load %arg3[%c0_4, %c0_5] : memref<8x32xf32, #tpu.memory_space<vmem>>, vector<8x32xf32>
    %10 = arith.addf %8, %9 : vector<8x32xf32>
    %11 = arith.negf %10 : vector<8x32xf32>
    %12 = math.exp %11 : vector<8x32xf32>
    %cst_6 = arith.constant 1.000000e+00 : f32
    %13 = vector.broadcast %cst_6 : f32 to vector<8x32xf32>
    %14 = arith.addf %13, %12 : vector<8x32xf32>
    %15 = arith.divf %13, %14 : vector<8x32xf32>
    %16 = vector.extract_strided_slice %5 {offsets = [16, 0], sizes = [8, 32], strides = [1, 1]} : vector<40x32xf32> to vector<8x32xf32>
    %17 = vector.extract_strided_slice %5 {offsets = [24, 0], sizes = [8, 32], strides = [1, 1]} : vector<40x32xf32> to vector<8x32xf32>
    %18 = arith.addf %16, %17 : vector<8x32xf32>
    %c0_7 = arith.constant 0 : index
    %c0_8 = arith.constant 0 : index
    %19 = vector.load %arg4[%c0_7, %c0_8] : memref<8x32xf32, #tpu.memory_space<vmem>>, vector<8x32xf32>
    %20 = arith.addf %18, %19 : vector<8x32xf32>
    %21 = arith.negf %20 : vector<8x32xf32>
    %22 = math.exp %21 : vector<8x32xf32>
    %cst_9 = arith.constant 1.000000e+00 : f32
    %23 = vector.broadcast %cst_9 : f32 to vector<8x32xf32>
    %24 = arith.addf %23, %22 : vector<8x32xf32>
    %25 = arith.divf %23, %24 : vector<8x32xf32>
    %26 = vector.extract_strided_slice %5 {offsets = [32, 0], sizes = [8, 32], strides = [1, 1]} : vector<40x32xf32> to vector<8x32xf32>
    %c0_10 = arith.constant 0 : index
    %c0_11 = arith.constant 0 : index
    %27 = vector.load %arg2[%c0_10, %c0_11] : memref<8x8xf32, #tpu.memory_space<vmem>>, vector<8x8xf32>
    %28 = arith.mulf %25, %3 : vector<8x32xf32>
    %cst_12 = arith.constant dense<0.000000e+00> : vector<8x32xf32>
    %29 = tpu.matmul %27, %28, %cst_12 {dimension_numbers = #tpu.dot_dimension_numbers<[1], [0], [0], [1], [0, 0, 1, 1], [], []>} : vector<8x8xf32>, vector<8x32xf32>, vector<8x32xf32> -> vector<8x32xf32>
    %30 = arith.addf %26, %29 : vector<8x32xf32>
    %c0_13 = arith.constant 0 : index
    %c0_14 = arith.constant 0 : index
    %31 = vector.load %arg5[%c0_13, %c0_14] : memref<8x32xf32, #tpu.memory_space<vmem>>, vector<8x32xf32>
    %32 = arith.addf %30, %31 : vector<8x32xf32>
    %33 = math.tanh %32 : vector<8x32xf32>
    %cst_15 = arith.constant 1.000000e+00 : f32
    %34 = vector.broadcast %cst_15 : f32 to vector<8x32xf32>
    %35 = arith.subf %34, %15 : vector<8x32xf32>
    %36 = arith.mulf %35, %3 : vector<8x32xf32>
    %37 = arith.mulf %15, %33 : vector<8x32xf32>
    %38 = arith.addf %36, %37 : vector<8x32xf32>
    %c0_16 = arith.constant 0 : index
    %c0_17 = arith.constant 0 : index
    %39 = vector.load %arg8[%c0_16, %c0_17] : memref<8x32xf32, #tpu.memory_space<vmem>>, vector<8x32xf32>
    tpu.vector_store %arg8[%c0_16, %c0_17], %38 {strides = array<i32>} : memref<8x32xf32, #tpu.memory_space<vmem>>, vector<8x32xf32>,
    %c0_18 = arith.constant 0 : index
    %c0_19 = arith.constant 0 : index
    %c0_20 = arith.constant 0 : index
    %40 = vector.load %arg7[%c0_18, %c0_19, %c0_20] : memref<1x8x32xf32, #tpu.memory_space<vmem>>, vector<1x8x32xf32>
    %41 = vector.shape_cast %40 : vector<1x8x32xf32> to vector<8x32xf32>
    %42 = vector.shape_cast %38 : vector<8x32xf32> to vector<1x8x32xf32>
    tpu.vector_store %arg7[%c0_18, %c0_19, %c0_20], %42 {strides = array<i32>} : memref<1x8x32xf32, #tpu.memory_space<vmem>>, vector<1x8x32xf32>,
    return
  }
  func.func @transform_0(%arg0: i32) -> (i32, i32) {
    %c0_i32 = arith.constant 0 : i32
    %c0_i32_0 = arith.constant 0 : i32
    %c0_i32_1 = arith.constant 0 : i32
    return %c0_i32, %c0_i32_0 : i32, i32
  }
  func.func @transform_1(%arg0: i32) -> (i32, i32) {
    %c0_i32 = arith.constant 0 : i32
    %c0_i32_0 = arith.constant 0 : i32
    %c0_i32_1 = arith.constant 0 : i32
    return %c0_i32, %c0_i32_0 : i32, i32
  }
  func.func @transform_2(%arg0: i32) -> (i32, i32) {
    %c0_i32 = arith.constant 0 : i32
    %c0_i32_0 = arith.constant 0 : i32
    %c0_i32_1 = arith.constant 0 : i32
    return %c0_i32, %c0_i32_0 : i32, i32
  }
  func.func @transform_3(%arg0: i32) -> (i32, i32) {
    %c0_i32 = arith.constant 0 : i32
    %c0_i32_0 = arith.constant 0 : i32
    %c0_i32_1 = arith.constant 0 : i32
    return %c0_i32, %c0_i32_0 : i32, i32
  }
  func.func @transform_4(%arg0: i32) -> (i32, i32) {
    %c0_i32 = arith.constant 0 : i32
    %c0_i32_0 = arith.constant 0 : i32
    %c0_i32_1 = arith.constant 0 : i32
    return %c0_i32, %c0_i32_0 : i32, i32
  }
  func.func @transform_5(%arg0: i32) -> (i32, i32) {
    %c0_i32 = arith.constant 0 : i32
    %c0_i32_0 = arith.constant 0 : i32
    %c0_i32_1 = arith.constant 0 : i32
    return %c0_i32, %c0_i32_0 : i32, i32
  }
  func.func @transform_6(%arg0: i32) -> (i32, i32, i32) {
    %c0_i32 = arith.constant 0 : i32
    %c0_i32_0 = arith.constant 0 : i32
    %c0_i32_1 = arith.constant 0 : i32
    return %arg0, %c0_i32, %c0_i32_0 : i32, i32, i32
  }
}

</mosaic_0001>

<llo_original>
// kernel: tpu_custom_call.1
$region0: #{tpu_custom_call.1}
  #allocation0 [shape = 'u32[]', space=smem, size = 0x4, offset = 0x4, fixed_abs, tag = 'smem constant byte address 0x4 - core index']
  #allocation1 [shape = 'u32[144,128]{1,0:T(1,128)}', space=vmem, size = 0x12000, scoped, tag = 'internal scratch']
  #allocation2 [shape = 'f32[8,32]{1,0:T(8,128)}', space=vmem, size = 0x1000, scoped, tag = 'scratch operand']
  %s0 = inlined_call_operand.vmem [shape: f32[40,8], index: 0, kind: input, shape index: {}]
  %s1 = inlined_call_operand.vmem [shape: f32[8,8], index: 1, kind: input, shape index: {}]
  %s2 = inlined_call_operand.vmem [shape: f32[8,32], index: 2, kind: input, shape index: {}]
  %s3 = inlined_call_operand.vmem [shape: f32[8,32], index: 3, kind: input, shape index: {}]
  %s4 = inlined_call_operand.vmem [shape: f32[8,32], index: 4, kind: input, shape index: {}]
  %s5 = inlined_call_operand.vmem [shape: f32[8,32], index: 5, kind: input, shape index: {}]
  %s6 = inlined_call_operand.hbm [shape: f32[3,8,32], index: 6, kind: output, shape index: {}]
  %s7 = sld [smem:[#allocation0]]
  $region61: #{tpu_custom_call.1} parent=0
    _
  %s9 = ssub.s32 1, %s7
  %s10 = scalar_select 0, %s9, %s7
  $region1: #{tpu_custom_call.1} parent=0
    #allocation3 [shape = 'u8[8192]{0}', space=vmem, size = 0x2000, scoped, tag = 'output window, operand 0']
    #allocation4 [shape = 's32[2]{0}', space=sflag, size = 0x8, scoped, tag = 'scoped memory for tpu_custom_call.1']
    %11 = vsyncpa [#allocation4], 0
    %s12 = scalar_lea.sflag [#allocation4], 1
    %13 = vsyncpa %s12, 0
    loop: start=0, step=1, limit=5
    $region2: #{tpu_custom_call.1} parent=1 // loop_pre_header
      _
    $region3: #{tpu_custom_call.1} parent=1 // loop_header
      %s15 = sphi 0, %s19
      %p16 = scmp.ge.s32.totalorder %s15, 5
      %s23 = sphi 0, %s23
      %s25 = sphi 0, %s23
      %s26 = sphi 0, %s25
      %s40 = sphi 0, %s26
      %s44 = sphi 0, %s44
      %s46 = sphi 0, %s44
      %s47 = sphi 0, %s46
      %s61 = sphi 0, %s47
      %s65 = sphi 0, %s65
      %s67 = sphi 0, %s65
      %s68 = sphi 0, %s67
      %s82 = sphi 0, %s68
      %s86 = sphi 0, %s86
      %s88 = sphi 0, %s86
      %s89 = sphi 0, %s88
      %s103 = sphi 0, %s89
      %s107 = sphi 0, %s107
      %s109 = sphi 0, %s107
      %s110 = sphi 0, %s109
      %s124 = sphi 0, %s110
      %s128 = sphi 0, %s128
      %s130 = sphi 0, %s128
      %s131 = sphi 0, %s130
      %s145 = sphi 0, %s131
      %s151 = sphi 0, %s153
      %s154 = sphi 0, %s151
      %s155 = sphi 0, %s154
      %s171 = sphi 0, %s155
    $region4: #{tpu_custom_call.1} parent=1 // loop_header_branch
      %18 = sbr.rel (%p16) target = $region8
    $region5: #{tpu_custom_call.1} parent=1 // loop_body
      %s20 = ssub.s32 %s15, 1
      %s21 = ssub.s32 %s15, 2
      %s22 = sadd.s32 %s15, 1
      %s24 = sadd.s32 %s23, 1
      %p27 = scmp.eq.s32.totalorder %s15, 2
      %p28 = scmp.ne.s32.totalorder %s23, %s25
      %p29 = scmp.eq.s32.totalorder %s15, 0
      %p30 = por %p28, %p29
      %p31 = scmp.ne.s32.totalorder %s23, %s25
      %p32 = scmp.eq.s32.totalorder %s20, 2
      %p33 = por %p31, %p32
      %p34 = scmp.ne.s32.totalorder %s25, %s26
      %p35 = scmp.eq.s32.totalorder %s20, 0
      %p36 = por %p34, %p35
      %p37 = scmp.ne.s32.totalorder %s25, %s26
      %p38 = scmp.eq.s32.totalorder %s21, 2
      %p39 = por %p37, %p38
      %p41 = scmp.ne.s32.totalorder %s26, %s40
      %p42 = scmp.eq.s32.totalorder %s21, 0
      %p43 = por %p41, %p42
      %s45 = sadd.s32 %s44, 1
      %p48 = scmp.eq.s32.totalorder %s15, 2
      %p49 = scmp.ne.s32.totalorder %s44, %s46
      %p50 = scmp.eq.s32.totalorder %s15, 0
      %p51 = por %p49, %p50
      %p52 = scmp.ne.s32.totalorder %s44, %s46
      %p53 = scmp.eq.s32.totalorder %s20, 2
      %p54 = por %p52, %p53
      %p55 = scmp.ne.s32.totalorder %s46, %s47
      %p56 = scmp.eq.s32.totalorder %s20, 0
      %p57 = por %p55, %p56
      %p58 = scmp.ne.s32.totalorder %s46, %s47
      %p59 = scmp.eq.s32.totalorder %s21, 2
      %p60 = por %p58, %p59
      %p62 = scmp.ne.s32.totalorder %s47, %s61
      %p63 = scmp.eq.s32.totalorder %s21, 0
      %p64 = por %p62, %p63
      %s66 = sadd.s32 %s65, 1
      %p69 = scmp.eq.s32.totalorder %s15, 2
      %p70 = scmp.ne.s32.totalorder %s65, %s67
      %p71 = scmp.eq.s32.totalorder %s15, 0
      %p72 = por %p70, %p71
      %p73 = scmp.ne.s32.totalorder %s65, %s67
      %p74 = scmp.eq.s32.totalorder %s20, 2
      %p75 = por %p73, %p74
      %p76 = scmp.ne.s32.totalorder %s67, %s68
      %p77 = scmp.eq.s32.totalorder %s20, 0
      %p78 = por %p76, %p77
      %p79 = scmp.ne.s32.totalorder %s67, %s68
      %p80 = scmp.eq.s32.totalorder %s21, 2
      %p81 = por %p79, %p80
      %p83 = scmp.ne.s32.totalorder %s68, %s82
      %p84 = scmp.eq.s32.totalorder %s21, 0
      %p85 = por %p83, %p84
      %s87 = sadd.s32 %s86, 1
      %p90 = scmp.eq.s32.totalorder %s15, 2
      %p91 = scmp.ne.s32.totalorder %s86, %s88
      %p92 = scmp.eq.s32.totalorder %s15, 0
      %p93 = por %p91, %p92
      %p94 = scmp.ne.s32.totalorder %s86, %s88
      %p95 = scmp.eq.s32.totalorder %s20, 2
      %p96 = por %p94, %p95
      %p97 = scmp.ne.s32.totalorder %s88, %s89
      %p98 = scmp.eq.s32.totalorder %s20, 0
      %p99 = por %p97, %p98
      %p100 = scmp.ne.s32.totalorder %s88, %s89
      %p101 = scmp.eq.s32.totalorder %s21, 2
      %p102 = por %p100, %p101
      %p104 = scmp.ne.s32.totalorder %s89, %s103
      %p105 = scmp.eq.s32.totalorder %s21, 0
      %p106 = por %p104, %p105
      %s108 = sadd.s32 %s107, 1
      %p111 = scmp.eq.s32.totalorder %s15, 2
      %p112 = scmp.ne.s32.totalorder %s107, %s109
      %p113 = scmp.eq.s32.totalorder %s15, 0
      %p114 = por %p112, %p113
      %p115 = scmp.ne.s32.totalorder %s107, %s109
      %p116 = scmp.eq.s32.totalorder %s20, 2
      %p117 = por %p115, %p116
      %p118 = scmp.ne.s32.totalorder %s109, %s110
      %p119 = scmp.eq.s32.totalorder %s20, 0
      %p120 = por %p118, %p119
      %p121 = scmp.ne.s32.totalorder %s109, %s110
      %p122 = scmp.eq.s32.totalorder %s21, 2
      %p123 = por %p121, %p122
      %p125 = scmp.ne.s32.totalorder %s110, %s124
      %p126 = scmp.eq.s32.totalorder %s21, 0
      %p127 = por %p125, %p126
      %s129 = sadd.s32 %s128, 1
      %p132 = scmp.eq.s32.totalorder %s15, 2
      %p133 = scmp.ne.s32.totalorder %s128, %s130
      %p134 = scmp.eq.s32.totalorder %s15, 0
      %p135 = por %p133, %p134
      %p136 = scmp.ne.s32.totalorder %s128, %s130
      %p137 = scmp.eq.s32.totalorder %s20, 2
      %p138 = por %p136, %p137
      %p139 = scmp.ne.s32.totalorder %s130, %s131
      %p140 = scmp.eq.s32.totalorder %s20, 0
      %p141 = por %p139, %p140
      %p142 = scmp.ne.s32.totalorder %s130, %s131
      %p143 = scmp.eq.s32.totalorder %s21, 2
      %p144 = por %p142, %p143
      %p146 = scmp.ne.s32.totalorder %s131, %s145
      %p147 = scmp.eq.s32.totalorder %s21, 0
      %p148 = por %p146, %p147
      %s149 = ssub.s32 %s15, %s22
      %p150 = scmp.eq.s32.totalorder %s149, 0
      %s152 = sadd.s32 %s151, 1
      %s153 = scalar_select %p150, %s151, %s152
      %p156 = pneg %p150
      %p157 = scmp.eq.s32.totalorder %s15, 2
      %p158 = por %p156, %p157
      %p159 = scmp.ne.s32.totalorder %s151, %s154
      %p160 = scmp.eq.s32.totalorder %s15, 0
      %p161 = por %p159, %p160
      %p162 = scmp.ne.s32.totalorder %s151, %s154
      %p163 = scmp.eq.s32.totalorder %s20, 2
      %p164 = por %p162, %p163
      %p165 = scmp.ne.s32.totalorder %s154, %s155
      %p166 = scmp.eq.s32.totalorder %s20, 0
      %p167 = por %p165, %p166
      %p168 = scmp.ne.s32.totalorder %s154, %s155
      %p169 = scmp.eq.s32.totalorder %s21, 2
      %p170 = por %p168, %p169
      %p172 = scmp.ne.s32.totalorder %s155, %s171
      %p173 = scmp.eq.s32.totalorder %s21, 0
      %p174 = por %p172, %p173
      %p175 = scmp.le.s32.totalorder 1, %s15
      %p176 = scmp.lt.s32.totalorder %s15, 4
      %p177 = pnand %p175, %p176
      %p178 = pneg %p177
      // Predicated region
      $region9: #{tpu_custom_call.1} parent=5 // pred_check
        _
      $region10: #{tpu_custom_call.1} parent=5 // pred_check_branch
        %180 = sbr.rel (%p177) target = $region12
      $region11: #{tpu_custom_call.1} parent=5 // pred_region
        %s181 = ssub.s32 %s15, 1
        // Predicated region
        $region13: #{tpu_custom_call.1} parent=11 // pred_check
          %p182 = pneg %p36
        $region14: #{tpu_custom_call.1} parent=11 // pred_check_branch
          %184 = sbr.rel (%p182) target = $region16
        $region15: #{tpu_custom_call.1} parent=11 // pred_region
          _
        $region16: #{tpu_custom_call.1} parent=11 // pred_fallthru
          _
        // Predicated region
        $region17: #{tpu_custom_call.1} parent=11 // pred_check
          %p185 = pneg %p57
        $region18: #{tpu_custom_call.1} parent=11 // pred_check_branch
          %187 = sbr.rel (%p185) target = $region20
        $region19: #{tpu_custom_call.1} parent=11 // pred_region
          _
        $region20: #{tpu_custom_call.1} parent=11 // pred_fallthru
          _
        // Predicated region
        $region21: #{tpu_custom_call.1} parent=11 // pred_check
          %p188 = pneg %p78
        $region22: #{tpu_custom_call.1} parent=11 // pred_check_branch
          %190 = sbr.rel (%p188) target = $region24
        $region23: #{tpu_custom_call.1} parent=11 // pred_region
          _
        $region24: #{tpu_custom_call.1} parent=11 // pred_fallthru
          _
        // Predicated region
        $region25: #{tpu_custom_call.1} parent=11 // pred_check
          %p191 = pneg %p99
        $region26: #{tpu_custom_call.1} parent=11 // pred_check_branch
          %193 = sbr.rel (%p191) target = $region28
        $region27: #{tpu_custom_call.1} parent=11 // pred_region
          _
        $region28: #{tpu_custom_call.1} parent=11 // pred_fallthru
          _
        // Predicated region
        $region29: #{tpu_custom_call.1} parent=11 // pred_check
          %p194 = pneg %p120
        $region30: #{tpu_custom_call.1} parent=11 // pred_check_branch
          %196 = sbr.rel (%p194) target = $region32
        $region31: #{tpu_custom_call.1} parent=11 // pred_region
          _
        $region32: #{tpu_custom_call.1} parent=11 // pred_fallthru
          _
        // Predicated region
        $region33: #{tpu_custom_call.1} parent=11 // pred_check
          %p197 = pneg %p141
        $region34: #{tpu_custom_call.1} parent=11 // pred_check_branch
          %199 = sbr.rel (%p197) target = $region36
        $region35: #{tpu_custom_call.1} parent=11 // pred_region
          _
        $region36: #{tpu_custom_call.1} parent=11 // pred_fallthru
          _
      $region12: #{tpu_custom_call.1} parent=5 // pred_fallthru
        _
      %p200 = scmp.lt.s32.totalorder %s15, 3
      // Predicated region
      $region37: #{tpu_custom_call.1} parent=5 // pred_check
        %p201 = pneg %p200
      $region38: #{tpu_custom_call.1} parent=5 // pred_check_branch
        %203 = sbr.rel (%p201) target = $region40
      $region39: #{tpu_custom_call.1} parent=5 // pred_region
        _
      $region40: #{tpu_custom_call.1} parent=5 // pred_fallthru
        _
      %p204 = scmp.le.s32.totalorder 1, %s15
      %p205 = scmp.lt.s32.totalorder %s15, 4
      %p206 = pnand %p204, %p205
      %p207 = pneg %p206
      // Predicated region
      $region41: #{tpu_custom_call.1} parent=5 // pred_check
        _
      $region42: #{tpu_custom_call.1} parent=5 // pred_check_branch
        %209 = sbr.rel (%p206) target = $region44
      $region43: #{tpu_custom_call.1} parent=5 // pred_region
        %s210 = ssub.s32 %s15, 1
        %p211 = pneg %p36
        %p212 = pneg %p33
        %p213 = pneg %p57
        %p214 = pneg %p54
        %p215 = pneg %p78
        %p216 = pneg %p75
        %p217 = pneg %p99
        %p218 = pneg %p96
        %p219 = pneg %p120
        %p220 = pneg %p117
        %p221 = pneg %p141
        %p222 = pneg %p138
        %p223 = pneg %p167
        %p224 = pneg %p164
        %s225 = sand.u32 %s154, 1
        %s226 = scalar_lea.sflag [#allocation4], %s225
        %s227 = sand.u32 %s154, 1
        %s228 = smul.addr %s227, 8
        %s229 = scalar_lea.vmem [#allocation3], %s228
        %p230 = scmp.eq.s32.totalorder %s20, 0
        // Predicated region
        $region45: #{tpu_custom_call.1} parent=43 // pred_check
          %p231 = pneg %p230
        $region46: #{tpu_custom_call.1} parent=43 // pred_check_branch
          %233 = sbr.rel (%p231) target = $region48
        $region47: #{tpu_custom_call.1} parent=43 // pred_region
          %v234 = vld [vmem:[%s5] sm:$0xff]
          %vm235 = vcmask 261120
          %236 = vst.msk [vmem:[#allocation2] sm:$0xff] %vm235, %v234
        $region48: #{tpu_custom_call.1} parent=43 // pred_fallthru
          _
        %v237 = vld [vmem:[#allocation2] sm:$0xff]
        %v238 = vld [vmem:[%s0] sm:$0xff]
        %v239 = vld [vmem:[%s0 + $0x8] sm:$0xff]
        %v240 = vld [vmem:[%s0 + $0x10] sm:$0xff]
        %v241 = vld [vmem:[%s0 + $0x18] sm:$0xff]
        %v242 = vld [vmem:[%s0 + $0x20] sm:$0xff]
        %vm243 = vcmask 64512
        %v245 = vsel %vm243, %v238, 0
        %v248 = vsel %vm243, %v239, 0
        %v251 = vsel %vm243, %v240, 0
        %v254 = vsel %vm243, %v241, 0
        %v257 = vsel %vm243, %v242, 0
        %259 = vmatprep.subr.mxu0 0.0
        %260 = vmatpush1.msra.mxu0 %v237
        %261 = vmatprep.subr.mxu0 0.0
        %262 = vmatpush1.msra.mxu0 0.0
        %263 = vmatprep.subr.mxu0 0.0
        %264 = vmatpush1.msra.mxu0 0.0
        %265 = vmatprep.subr.mxu0 0.0
        %266 = vmatpush1.msra.mxu0 0.0
        %267 = vmatprep.subr.mxu0 0.0
        %268 = vmatpush1.msra.mxu0 0.0
        %269 = vmatprep.subr.mxu0 0.0
        %270 = vmatpush1.msra.mxu0 0.0
        %271 = vmatprep.subr.mxu0 0.0
        %272 = vmatpush1.msra.mxu0 0.0
        %273 = vmatprep.subr.mxu0 0.0
        %274 = vmatpush1.msra.mxu0 0.0
        %275 = vmatprep.subr.mxu0 0.0
        %276 = vmatpush1.msra.mxu0 0.0
        %277 = vmatprep.subr.mxu0 0.0
        %278 = vmatpush1.msra.mxu0 0.0
        %279 = vmatprep.subr.mxu0 0.0
        %280 = vmatpush1.msra.mxu0 0.0
        %281 = vmatprep.subr.mxu0 0.0
        %282 = vmatpush1.msra.mxu0 0.0
        %283 = vmatprep.subr.mxu0 0.0
        %284 = vmatpush1.msra.mxu0 0.0
        %285 = vmatprep.subr.mxu0 0.0
        %286 = vmatpush1.msra.mxu0 0.0
        %287 = vmatprep.subr.mxu0 0.0
        %288 = vmatpush1.msra.mxu0 0.0
        %289 = vmatprep.subr.mxu0 0.0
        %290 = vmatpush1.msra.mxu0 0.0
        %291 = vmatprep.subr.mxu0 0.0
        %292 = vmatpush1.msra.mxu0 0.0
        %293 = vmatprep.subr.mxu0 0.0
        %294 = vmatpush1.msra.mxu0 0.0
        %295 = vmatprep.subr.mxu0 0.0
        %296 = vmatpush1.msra.mxu0 0.0
        %297 = vmatprep.subr.mxu0 0.0
        %298 = vmatpush1.msra.mxu0 0.0
        %299 = vmatprep.subr.mxu0 0.0
        %300 = vmatpush1.msra.mxu0 0.0
        %301 = vmatprep.subr.mxu0 0.0
        %302 = vmatpush1.msra.mxu0 0.0
        %303 = vmatprep.subr.mxu0 0.0
        %304 = vmatpush1.msra.mxu0 0.0
        %305 = vmatprep.subr.mxu0 0.0
        %306 = vmatpush1.msra.mxu0 0.0
        %307 = vmatprep.subr.mxu0 0.0
        %308 = vmatpush1.msra.mxu0 0.0
        %309 = vmatprep.subr.mxu0 0.0
        %310 = vmatpush1.msra.mxu0 0.0
        %311 = vmatprep.subr.mxu0 0.0
        %312 = vmatpush1.msra.mxu0 0.0
        %313 = vmatprep.subr.mxu0 0.0
        %314 = vmatpush1.msra.mxu0 0.0
        %315 = vmatprep.subr.mxu0 0.0
        %316 = vmatpush1.msra.mxu0 0.0
        %317 = vmatprep.subr.mxu0 0.0
        %318 = vmatpush1.msra.mxu0 0.0
        %319 = vmatprep.subr.mxu0 0.0
        %320 = vmatpush1.msra.mxu0 0.0
        %321 = vmatprep.subr.mxu0 0.0
        %322 = vmatpush1.msra.mxu0 0.0
        %323 = vmatprep.mubr.f32.mxu0 0.0
        %324 = vmatmul.mubr.f32.gmra.mrb[0].mxu0 %v245
        %v325 = vpop.f32.mrb[0].mxu0
        %v326 = vadd.f32 0.0, %v325
        %v327 = vpop.f32.mrb[0].mxu0
        %328 = vmatprep.mubr.f32.mxu0 0.0
        %329 = vmatmul.mubr.f32.gmra.mrb[0].mxu0 %v248
        %v330 = vpop.f32.mrb[0].mxu0
        %v331 = vadd.f32 0.0, %v330
        %v332 = vpop.f32.mrb[0].mxu0
        %333 = vmatprep.mubr.f32.mxu0 0.0
        %334 = vmatmul.mubr.f32.gmra.mrb[0].mxu0 %v251
        %v335 = vpop.f32.mrb[0].mxu0
        %v336 = vadd.f32 0.0, %v335
        %v337 = vpop.f32.mrb[0].mxu0
        %338 = vmatprep.mubr.f32.mxu0 0.0
        %339 = vmatmul.mubr.f32.gmra.mrb[0].mxu0 %v254
        %v340 = vpop.f32.mrb[0].mxu0
        %v341 = vadd.f32 0.0, %v340
        %v342 = vpop.f32.mrb[0].mxu0
        %343 = vmatprep.mubr.f32.mxu0 0.0
        %344 = vmatmul.mubr.f32.gmra.mrb[0].mxu0 %v257
        %v345 = vpop.f32.mrb[0].mxu0
        %v346 = vadd.f32 0.0, %v345
        %v347 = vpop.f32.mrb[0].mxu0
        %348 = vdwg.mxu0
        %v349 = vadd.f32 %v326, %v331
        %v350 = vld [vmem:[%s2] sm:$0xff]
        %v351 = vadd.f32 %v349, %v350
        %v352 = vxor.u32 %v351, 2147483648
        %v353 = vmul.f32 %v352, 1.442695
        %v354 = vpow.pop %v353
        %v355 = vadd.f32 %v354, 1.0
        %v356 = vrcp.pop %v355
        %v357 = vmul.f32 1.0, %v356
        %v358 = vadd.f32 %v336, %v341
        %v359 = vld [vmem:[%s3] sm:$0xff]
        %v360 = vadd.f32 %v358, %v359
        %v361 = vxor.u32 %v360, 2147483648
        %v362 = vmul.f32 %v361, 1.442695
        %v363 = vpow.pop %v362
        %v364 = vadd.f32 %v363, 1.0
        %v365 = vrcp.pop %v364
        %v366 = vmul.f32 1.0, %v365
        %v367 = vld [vmem:[%s1] sm:$0xff]
        %v368 = vmul.f32 %v366, %v237
        %v370 = vsel %vm243, %v367, 0
        %372 = vmatprep.subr.mxu0 0.0
        %373 = vmatpush1.msra.mxu0 %v368
        %374 = vmatprep.subr.mxu0 0.0
        %375 = vmatpush1.msra.mxu0 0.0
        %376 = vmatprep.subr.mxu0 0.0
        %377 = vmatpush1.msra.mxu0 0.0
        %378 = vmatprep.subr.mxu0 0.0
        %379 = vmatpush1.msra.mxu0 0.0
        %380 = vmatprep.subr.mxu0 0.0
        %381 = vmatpush1.msra.mxu0 0.0
        %382 = vmatprep.subr.mxu0 0.0
        %383 = vmatpush1.msra.mxu0 0.0
        %384 = vmatprep.subr.mxu0 0.0
        %385 = vmatpush1.msra.mxu0 0.0
        %386 = vmatprep.subr.mxu0 0.0
        %387 = vmatpush1.msra.mxu0 0.0
        %388 = vmatprep.subr.mxu0 0.0
        %389 = vmatpush1.msra.mxu0 0.0
        %390 = vmatprep.subr.mxu0 0.0
        %391 = vmatpush1.msra.mxu0 0.0
        %392 = vmatprep.subr.mxu0 0.0
        %393 = vmatpush1.msra.mxu0 0.0
        %394 = vmatprep.subr.mxu0 0.0
        %395 = vmatpush1.msra.mxu0 0.0
        %396 = vmatprep.subr.mxu0 0.0
        %397 = vmatpush1.msra.mxu0 0.0
        %398 = vmatprep.subr.mxu0 0.0
        %399 = vmatpush1.msra.mxu0 0.0
        %400 = vmatprep.subr.mxu0 0.0
        %401 = vmatpush1.msra.mxu0 0.0
        %402 = vmatprep.subr.mxu0 0.0
        %403 = vmatpush1.msra.mxu0 0.0
        %404 = vmatprep.subr.mxu0 0.0
        %405 = vmatpush1.msra.mxu0 0.0
        %406 = vmatprep.subr.mxu0 0.0
        %407 = vmatpush1.msra.mxu0 0.0
        %408 = vmatprep.subr.mxu0 0.0
        %409 = vmatpush1.msra.mxu0 0.0
        %410 = vmatprep.subr.mxu0 0.0
        %411 = vmatpush1.msra.mxu0 0.0
        %412 = vmatprep.subr.mxu0 0.0
        %413 = vmatpush1.msra.mxu0 0.0
        %414 = vmatprep.subr.mxu0 0.0
        %415 = vmatpush1.msra.mxu0 0.0
        %416 = vmatprep.subr.mxu0 0.0
        %417 = vmatpush1.msra.mxu0 0.0
        %418 = vmatprep.subr.mxu0 0.0
        %419 = vmatpush1.msra.mxu0 0.0
        %420 = vmatprep.subr.mxu0 0.0
        %421 = vmatpush1.msra.mxu0 0.0
        %422 = vmatprep.subr.mxu0 0.0
        %423 = vmatpush1.msra.mxu0 0.0
        %424 = vmatprep.subr.mxu0 0.0
        %425 = vmatpush1.msra.mxu0 0.0
        %426 = vmatprep.subr.mxu0 0.0
        %427 = vmatpush1.msra.mxu0 0.0
        %428 = vmatprep.subr.mxu0 0.0
        %429 = vmatpush1.msra.mxu0 0.0
        %430 = vmatprep.subr.mxu0 0.0
        %431 = vmatpush1.msra.mxu0 0.0
        %432 = vmatprep.subr.mxu0 0.0
        %433 = vmatpush1.msra.mxu0 0.0
        %434 = vmatprep.subr.mxu0 0.0
        %435 = vmatpush1.msra.mxu0 0.0
        %436 = vmatprep.mubr.f32.mxu0 0.0
        %437 = vmatmul.mubr.f32.gmra.mrb[0].mxu0 %v370
        %v438 = vpop.f32.mrb[0].mxu0
        %v439 = vadd.f32 0.0, %v438
        %v440 = vpop.f32.mrb[0].mxu0
        %441 = vdwg.mxu0
        %v442 = vadd.f32 %v346, %v439
        %v443 = vld [vmem:[%s4] sm:$0xff]
        %v444 = vadd.f32 %v442, %v443
        %v445 = vtanh.pop %v444
        %v446 = vsub.f32 1.0, %v357
        %v447 = vmul.f32 %v446, %v237
        %v448 = vmul.f32 %v357, %v445
        %v449 = vadd.f32 %v447, %v448
        %vm450 = vcmask 261120
        %451 = vst.msk [vmem:[#allocation2] sm:$0xff] %vm450, %v449
        %452 = vst.msk [vmem:[%s229] sm:$0xff] %vm450, %v449
        %s453 = sand.u32 %s154, 1
        %s454 = scalar_lea.sflag [#allocation4], %s453
        %s455 = sand.u32 %s154, 1
        %s456 = smul.addr %s455, 8
        %s457 = scalar_lea.vmem [#allocation3], %s456
        // Predicated region
        $region49: #{tpu_custom_call.1} parent=43 // pred_check
          %p458 = pneg %p164
        $region50: #{tpu_custom_call.1} parent=43 // pred_check_branch
          %460 = sbr.rel (%p458) target = $region52
        $region51: #{tpu_custom_call.1} parent=43 // pred_region
          %s462 = ssub.s32 128, 128
          %463 = vsyncadd %s454, %s462
          %s464 = smul.addr %s20, 128
          %s465 = scalar_lea.hbm %s6, %s464
          %s467 = sshll.u32 %s457, 4
          %s468 = int_to_ptr.vmem [resolvable:$true] %s467
          %470 = dma.vmem_to_hbm [thread:$0]  %s468, 128, %s465, %s454
        $region52: #{tpu_custom_call.1} parent=43 // pred_fallthru
          _
      $region44: #{tpu_custom_call.1} parent=5 // pred_fallthru
        _
      %p471 = scmp.le.s32.totalorder 2, %s15
      // Predicated region
      $region53: #{tpu_custom_call.1} parent=5 // pred_check
        %p472 = pneg %p471
      $region54: #{tpu_custom_call.1} parent=5 // pred_check_branch
        %474 = sbr.rel (%p472) target = $region56
      $region55: #{tpu_custom_call.1} parent=5 // pred_region
        %s475 = ssub.s32 %s15, 2
        // Predicated region
        $region57: #{tpu_custom_call.1} parent=55 // pred_check
          %p476 = pneg %p170
        $region58: #{tpu_custom_call.1} parent=55 // pred_check_branch
          %478 = sbr.rel (%p476) target = $region60
        $region59: #{tpu_custom_call.1} parent=55 // pred_region
          %s479 = sand.u32 %s155, 1
          %s480 = scalar_lea.sflag [#allocation4], %s479
          %s481 = sand.u32 %s155, 1
          %s482 = smul.addr %s481, 8
          %s483 = scalar_lea.vmem [#allocation3], %s482
          %484 = dma.done %s480, 128
        $region60: #{tpu_custom_call.1} parent=55 // pred_fallthru
          _
      $region56: #{tpu_custom_call.1} parent=5 // pred_fallthru
        _
    $region6: #{tpu_custom_call.1} parent=1 // loop_footer
      %s19 = sadd.s32 1, %s15
    $region7: #{tpu_custom_call.1} parent=1 // loop_footer_branch
      %14 = sbr.rel target = $region3
    $region8: #{tpu_custom_call.1} parent=1 // loop_exit
      _
    %485 = vsyncpa [#allocation4], 1
    %s486 = scalar_lea.sflag [#allocation4], 1
    %487 = vsyncpa %s486, 1

</llo_original>
